<compile_context>
chip_gen: v7x
topology: tpu7x:2x2x1
jax: 0.10.0
libtpu: 0.0.40
codegen_flags: <defaults>
</compile_context>

<pallas_src>
import functools

import jax
import jax.numpy as jnp
import numpy as np
from jax import lax
from jax.experimental import pallas as pl
from jax.experimental.pallas import tpu as pltpu

BN_EPS = 1e-5
LANE = 128


def _round_up(x, m):
    return (x + m - 1) // m * m


def channel_mixing_kernel(x_ref, w_ref, vec_ref, o_ref, *, L, n_valid):
    # x_ref:   (Cin, BLp)     lane-dense activations, column j = b*L + l, zero-padded
    # w_ref:   (3, Cout, Cin) fused weights  Wk[o,c] = w_mix[o,c] * w_dw[c,k]
    # vec_ref: (3, Cout, 1)   [b_fused, gamma, beta]
    # o_ref:   (Cout, BLp)    lane-dense output slab
    x = x_ref[...]                                     # (Cin, BLp) f32
    Cin, BLp = x.shape

    lane = lax.broadcasted_iota(jnp.int32, (1, BLp), 1)
    pos = lane % L                                     # position within a length-L segment

    # depthwise k=3 / p=1 neighbour shifts along the lane axis.
    # Lane-axis slice+concat gives x[j-1] / x[j+1]; the iota mask zeros the
    # per-segment boundaries (so batches don't leak into each other).
    zcol = jnp.zeros((Cin, 1), x.dtype)
    x_m1 = jnp.concatenate([zcol, x[:, : BLp - 1]], axis=1)   # x[l-1] candidate
    x_p1 = jnp.concatenate([x[:, 1:], zcol], axis=1)          # x[l+1] candidate
    x_m1 = jnp.where(pos == 0, 0.0, x_m1)
    x_p1 = jnp.where(pos == (L - 1), 0.0, x_p1)

    w0 = w_ref[0]                                      # (Cout, Cin)
    w1 = w_ref[1]
    w2 = w_ref[2]
    b_fused = vec_ref[0]                               # (Cout, 1)
    gamma = vec_ref[1]
    beta = vec_ref[2]

    # depthwise conv folded into the channel-mixing matmul (lane-dense MXU passes)
    z = (jnp.dot(w1, x, preferred_element_type=jnp.float32)
         + jnp.dot(w0, x_m1, preferred_element_type=jnp.float32)
         + jnp.dot(w2, x_p1, preferred_element_type=jnp.float32)
         + b_fused)                                    # (Cout, BLp)

    # one-pass BatchNorm1d (training mode, biased variance) over the valid columns
    valid = lane < n_valid
    inv_n = 1.0 / float(n_valid)
    zsum = jnp.sum(jnp.where(valid, z, 0.0), axis=-1, keepdims=True)        # (Cout, 1)
    zsq = jnp.sum(jnp.where(valid, z * z, 0.0), axis=-1, keepdims=True)     # (Cout, 1)
    mu = zsum * inv_n
    var = jnp.maximum(zsq * inv_n - mu * mu, 0.0)
    inv_std = lax.rsqrt(var + BN_EPS)

    out = jnp.maximum(gamma * (z - mu) * inv_std + beta, 0.0)               # ReLU
    o_ref[...] = out.astype(o_ref.dtype)


def channel_mixing_conv1d(x, w_dw, b_dw, w_mix, b_mix, gamma, beta):
    """x: (B, Cin, L) f32 -> (B, Cout, L) f32 (matches the PyTorch module forward)."""
    B, Cin, L = x.shape
    Cout = w_mix.shape[0]
    BL = B * L
    BLp = max(_round_up(BL, LANE), LANE)

    # --- fold depthwise conv into mixing matmul (tiny, done once in the wrapper) ---
    w_pack = jnp.stack([w_mix * w_dw[:, k][None, :] for k in range(3)], axis=0)  # (3, Cout, Cin)
    b_fused = w_mix @ b_dw + b_mix                                               # (Cout, 1)
    vec_pack = jnp.stack([b_fused, gamma, beta], axis=0)                         # (3, Cout, 1)

    # --- lane-dense activation layout: (Cin, B*L) zero-padded to 128-lane multiple ---
    x_flat = jnp.transpose(x, (1, 0, 2)).reshape(Cin, BL)
    x_pad = jnp.pad(x_flat, ((0, 0), (0, BLp - BL)))

    kernel = functools.partial(channel_mixing_kernel, L=L, n_valid=BL)
    vmem = pl.BlockSpec(memory_space=pltpu.MemorySpace.VMEM)
    out_pad = pl.pallas_call(
        kernel,
        out_shape=jax.ShapeDtypeStruct((Cout, BLp), jnp.float32),
        in_specs=[vmem, vmem, vmem],
        out_specs=vmem,
    )(x_pad, w_pack, vec_pack)

    # layout plumbing back to (B, Cout, L)
    out = out_pad[:, :BL].reshape(Cout, B, L)
    return jnp.transpose(out, (1, 0, 2))


def _reference(x, w_dw, b_dw, w_mix, b_mix, gamma, beta):
    """Pure-JAX reference mirroring the PyTorch module (training-mode BN)."""
    xp = jnp.pad(x, ((0, 0), (0, 0), (1, 1)))
    y = (w_dw[None, :, 0:1] * xp[..., :-2]
         + w_dw[None, :, 1:2] * xp[..., 1:-1]
         + w_dw[None, :, 2:3] * xp[..., 2:]
         + b_dw[None])
    z = jnp.einsum('oc,bcl->bol', w_mix, y) + b_mix[None]
    mu = jnp.mean(z, axis=(0, 2), keepdims=True)
    var = jnp.mean((z - mu) ** 2, axis=(0, 2), keepdims=True)
    z_hat = (z - mu) / jnp.sqrt(var + BN_EPS)
    return jnp.maximum(gamma[None] * z_hat + beta[None], 0.0)


if __name__ == "__main__":
    B, C_IN, C_OUT, L = 2, 4, 8, 16

    key = jax.random.PRNGKey(0)
    k_x, k_wdw, k_bdw, k_wmix, k_bmix = jax.random.split(key, 5)

    # Deterministic synthetic parameters (shapes match the PyTorch module).
    x = jax.random.normal(k_x, (B, C_IN, L), jnp.float32)
    # C_IN independent Conv1d(1, 1, kernel_size=3): weights (C_IN, 3), bias (C_IN, 1)
    w_dw = jax.random.uniform(k_wdw, (C_IN, 3), jnp.float32, -0.5, 0.5)
    b_dw = jax.random.uniform(k_bdw, (C_IN, 1), jnp.float32, -0.5, 0.5)
    # mix_conv = Conv1d(C_IN, C_OUT, kernel_size=1): weights (C_OUT, C_IN), bias (C_OUT, 1)
    w_mix = jax.random.uniform(k_wmix, (C_OUT, C_IN), jnp.float32, -0.5, 0.5)
    b_mix = jax.random.uniform(k_bmix, (C_OUT, 1), jnp.float32, -0.5, 0.5)
    # BatchNorm1d default affine init: gamma = 1, beta = 0
    gamma = jnp.ones((C_OUT, 1), jnp.float32)
    beta = jnp.zeros((C_OUT, 1), jnp.float32)

    out = channel_mixing_conv1d(x, w_dw, b_dw, w_mix, b_mix, gamma, beta)
    jax.block_until_ready(out)
    assert out.shape == (B, C_OUT, L)

    ref = _reference(x, w_dw, b_dw, w_mix, b_mix, gamma, beta)
    np.testing.assert_allclose(np.asarray(out), np.asarray(ref), rtol=2e-4, atol=2e-4)

    print("KERNEL_OK")
</pallas_src>

<mosaic_0001>
module attributes {stable_mosaic.version = 11 : i64} {
  func.func @channel_mixing_kernel(%arg0: memref<4x128xf32, #tpu.memory_space<vmem>>, %arg1: memref<3x8x4xf32, #tpu.memory_space<vmem>>, %arg2: memref<3x8x1xf32, #tpu.memory_space<vmem>>, %arg3: memref<8x128xf32, #tpu.memory_space<vmem>>) attributes {dimension_semantics = [], scalar_prefetch = 0 : i64, scratch_operands = 0 : i64, tpu.core_type = #tpu.core_type<tc>} {
    %c0 = arith.constant 0 : index
    %c0_0 = arith.constant 0 : index
    %0 = vector.load %arg0[%c0, %c0_0] : memref<4x128xf32, #tpu.memory_space<vmem>>, vector<4x128xf32>
    %1 = tpu.iota {dimensions = array<i32: 1>} : vector<1x128xi32>
    %c16_i32 = arith.constant 16 : i32
    %c0_i32 = arith.constant 0 : i32
    %2 = arith.cmpi eq, %c16_i32, %c0_i32 : i32
    %c1_i32 = arith.constant 1 : i32
    %3 = arith.select %2, %c1_i32, %c16_i32 : i32
    %4 = vector.broadcast %3 : i32 to vector<1x128xi32>
    %5 = arith.remsi %1, %4 : vector<1x128xi32>
    %c0_i32_1 = arith.constant 0 : i32
    %6 = vector.broadcast %c0_i32_1 : i32 to vector<1x128xi32>
    %7 = arith.cmpi ne, %5, %6 : vector<1x128xi32>
    %c0_i32_2 = arith.constant 0 : i32
    %8 = vector.broadcast %c0_i32_2 : i32 to vector<1x128xi32>
    %9 = arith.cmpi slt, %5, %8 : vector<1x128xi32>
    %c0_i32_3 = arith.constant 0 : i32
    %10 = arith.cmpi slt, %3, %c0_i32_3 : i32
    %11 = vector.broadcast %10 : i1 to vector<1x128xi1>
    %12 = vector.broadcast %11 : vector<1x128xi1> to vector<1x128xi1>
    %13 = arith.xori %9, %12 : vector<1x128xi1>
    %14 = arith.andi %13, %7 : vector<1x128xi1>
    %15 = vector.broadcast %3 : i32 to vector<1x128xi32>
    %16 = arith.addi %5, %15 : vector<1x128xi32>
    %17 = arith.select %14, %16, %5 : vector<1x128xi1>, vector<1x128xi32>
    %cst = arith.constant 0.000000e+00 : f32
    %18 = vector.broadcast %cst : f32 to vector<4x1xf32>
    %19 = vector.extract_strided_slice %0 {offsets = [0, 0], sizes = [4, 127], strides = [1, 1]} : vector<4x128xf32> to vector<4x127xf32>
    %20 = tpu.concatenate %18, %19 in 1 : vector<4x1xf32>, vector<4x127xf32> -> vector<4x128xf32>
    %21 = vector.extract_strided_slice %0 {offsets = [0, 1], sizes = [4, 127], strides = [1, 1]} : vector<4x128xf32> to vector<4x127xf32>
    %22 = tpu.concatenate %21, %18 in 1 : vector<4x127xf32>, vector<4x1xf32> -> vector<4x128xf32>
    %c0_i32_4 = arith.constant 0 : i32
    %23 = vector.broadcast %c0_i32_4 : i32 to vector<1x128xi32>
    %24 = arith.cmpi eq, %17, %23 : vector<1x128xi32>
    %cst_5 = arith.constant 0.000000e+00 : f32
    %25 = vector.shape_cast %24 : vector<1x128xi1> to vector<1x128xi1>
    %26 = vector.broadcast %25 : vector<1x128xi1> to vector<4x128xi1>
    %27 = vector.broadcast %cst_5 : f32 to vector<4x128xf32>
    %28 = arith.select %26, %27, %20 : vector<4x128xi1>, vector<4x128xf32>
    %c15_i32 = arith.constant 15 : i32
    %29 = vector.broadcast %c15_i32 : i32 to vector<1x128xi32>
    %30 = arith.cmpi eq, %17, %29 : vector<1x128xi32>
    %cst_6 = arith.constant 0.000000e+00 : f32
    %31 = vector.shape_cast %30 : vector<1x128xi1> to vector<1x128xi1>
    %32 = vector.broadcast %31 : vector<1x128xi1> to vector<4x128xi1>
    %33 = vector.broadcast %cst_6 : f32 to vector<4x128xf32>
    %34 = arith.select %32, %33, %22 : vector<4x128xi1>, vector<4x128xf32>
    %c0_7 = arith.constant 0 : index
    %c0_8 = arith.constant 0 : index
    %c0_9 = arith.constant 0 : index
    %35 = vector.load %arg1[%c0_7, %c0_8, %c0_9] : memref<3x8x4xf32, #tpu.memory_space<vmem>>, vector<1x8x4xf32>
    %36 = vector.shape_cast %35 : vector<1x8x4xf32> to vector<8x4xf32>
    %c1 = arith.constant 1 : index
    %c0_10 = arith.constant 0 : index
    %c0_11 = arith.constant 0 : index
    %37 = vector.load %arg1[%c1, %c0_10, %c0_11] : memref<3x8x4xf32, #tpu.memory_space<vmem>>, vector<1x8x4xf32>
    %38 = vector.shape_cast %37 : vector<1x8x4xf32> to vector<8x4xf32>
    %c2 = arith.constant 2 : index
    %c0_12 = arith.constant 0 : index
    %c0_13 = arith.constant 0 : index
    %39 = vector.load %arg1[%c2, %c0_12, %c0_13] : memref<3x8x4xf32, #tpu.memory_space<vmem>>, vector<1x8x4xf32>
    %40 = vector.shape_cast %39 : vector<1x8x4xf32> to vector<8x4xf32>
    %c0_14 = arith.constant 0 : index
    %c0_15 = arith.constant 0 : index
    %c0_16 = arith.constant 0 : index
    %41 = vector.load %arg2[%c0_14, %c0_15, %c0_16] : memref<3x8x1xf32, #tpu.memory_space<vmem>>, vector<1x8x1xf32>
    %42 = vector.shape_cast %41 : vector<1x8x1xf32> to vector<8x1xf32>
    %c1_17 = arith.constant 1 : index
    %c0_18 = arith.constant 0 : index
    %c0_19 = arith.constant 0 : index
    %43 = vector.load %arg2[%c1_17, %c0_18, %c0_19] : memref<3x8x1xf32, #tpu.memory_space<vmem>>, vector<1x8x1xf32>
    %44 = vector.shape_cast %43 : vector<1x8x1xf32> to vector<8x1xf32>
    %c2_20 = arith.constant 2 : index
    %c0_21 = arith.constant 0 : index
    %c0_22 = arith.constant 0 : index
    %45 = vector.load %arg2[%c2_20, %c0_21, %c0_22] : memref<3x8x1xf32, #tpu.memory_space<vmem>>, vector<1x8x1xf32>
    %46 = vector.shape_cast %45 : vector<1x8x1xf32> to vector<8x1xf32>
    %cst_23 = arith.constant dense<0.000000e+00> : vector<8x128xf32>
    %47 = tpu.matmul %38, %0, %cst_23 {dimension_numbers = #tpu.dot_dimension_numbers<[1], [0], [0], [1], [0, 0, 1, 1], [], []>} : vector<8x4xf32>, vector<4x128xf32>, vector<8x128xf32> -> vector<8x128xf32>
    %cst_24 = arith.constant dense<0.000000e+00> : vector<8x128xf32>
    %48 = tpu.matmul %36, %28, %cst_24 {dimension_numbers = #tpu.dot_dimension_numbers<[1], [0], [0], [1], [0, 0, 1, 1], [], []>} : vector<8x4xf32>, vector<4x128xf32>, vector<8x128xf32> -> vector<8x128xf32>
    %49 = arith.addf %47, %48 : vector<8x128xf32>
    %cst_25 = arith.constant dense<0.000000e+00> : vector<8x128xf32>
    %50 = tpu.matmul %40, %34, %cst_25 {dimension_numbers = #tpu.dot_dimension_numbers<[1], [0], [0], [1], [0, 0, 1, 1], [], []>} : vector<8x4xf32>, vector<4x128xf32>, vector<8x128xf32> -> vector<8x128xf32>
    %51 = arith.addf %49, %50 : vector<8x128xf32>
    %52 = vector.broadcast %42 : vector<8x1xf32> to vector<8x128xf32>
    %53 = arith.addf %51, %52 : vector<8x128xf32>
    %c32_i32 = arith.constant 32 : i32
    %54 = vector.broadcast %c32_i32 : i32 to vector<1x128xi32>
    %55 = arith.cmpi slt, %1, %54 : vector<1x128xi32>
    %cst_26 = arith.constant 0.000000e+00 : f32
    %56 = vector.shape_cast %55 : vector<1x128xi1> to vector<1x128xi1>
    %57 = vector.broadcast %56 : vector<1x128xi1> to vector<8x128xi1>
    %58 = vector.broadcast %cst_26 : f32 to vector<8x128xf32>
    %59 = arith.select %57, %53, %58 : vector<8x128xi1>, vector<8x128xf32>
    %cst_27 = arith.constant dense<0.000000e+00> : vector<8xf32>
    %60 = vector.multi_reduction <add>, %59, %cst_27 [1] : vector<8x128xf32> to vector<8xf32>
    %61 = vector.shape_cast %60 : vector<8xf32> to vector<8x1xf32>
    %62 = arith.mulf %53, %53 : vector<8x128xf32>
    %cst_28 = arith.constant 0.000000e+00 : f32
    %63 = vector.shape_cast %55 : vector<1x128xi1> to vector<1x128xi1>
    %64 = vector.broadcast %63 : vector<1x128xi1> to vector<8x128xi1>
    %65 = vector.broadcast %cst_28 : f32 to vector<8x128xf32>
    %66 = arith.select %64, %62, %65 : vector<8x128xi1>, vector<8x128xf32>
    %cst_29 = arith.constant dense<0.000000e+00> : vector<8xf32>
    %67 = vector.multi_reduction <add>, %66, %cst_29 [1] : vector<8x128xf32> to vector<8xf32>
    %68 = vector.shape_cast %67 : vector<8xf32> to vector<8x1xf32>
    %cst_30 = arith.constant 3.125000e-02 : f32
    %69 = vector.broadcast %cst_30 : f32 to vector<8x1xf32>
    %70 = arith.mulf %61, %69 : vector<8x1xf32>
    %cst_31 = arith.constant 3.125000e-02 : f32
    %71 = vector.broadcast %cst_31 : f32 to vector<8x1xf32>
    %72 = arith.mulf %68, %71 : vector<8x1xf32>
    %73 = arith.mulf %70, %70 : vector<8x1xf32>
    %74 = arith.subf %72, %73 : vector<8x1xf32>
    %cst_32 = arith.constant 0.000000e+00 : f32
    %75 = vector.broadcast %cst_32 : f32 to vector<8x1xf32>
    %76 = arith.maximumf %74, %75 : vector<8x1xf32>
    %cst_33 = arith.constant 9.99999974E-6 : f32
    %77 = vector.broadcast %cst_33 : f32 to vector<8x1xf32>
    %78 = arith.addf %76, %77 : vector<8x1xf32>
    %79 = math.rsqrt %78 : vector<8x1xf32>
    %80 = vector.broadcast %70 : vector<8x1xf32> to vector<8x128xf32>
    %81 = arith.subf %53, %80 : vector<8x128xf32>
    %82 = vector.broadcast %44 : vector<8x1xf32> to vector<8x128xf32>
    %83 = arith.mulf %82, %81 : vector<8x128xf32>
    %84 = vector.broadcast %79 : vector<8x1xf32> to vector<8x128xf32>
    %85 = arith.mulf %83, %84 : vector<8x128xf32>
    %86 = vector.broadcast %46 : vector<8x1xf32> to vector<8x128xf32>
    %87 = arith.addf %85, %86 : vector<8x128xf32>
    %cst_34 = arith.constant 0.000000e+00 : f32
    %88 = vector.broadcast %cst_34 : f32 to vector<8x128xf32>
    %89 = arith.maximumf %87, %88 : vector<8x128xf32>
    %c0_35 = arith.constant 0 : index
    %c0_36 = arith.constant 0 : index
    %90 = vector.load %arg3[%c0_35, %c0_36] : memref<8x128xf32, #tpu.memory_space<vmem>>, vector<8x128xf32>
    tpu.vector_store %arg3[%c0_35, %c0_36], %89 {strides = array<i32>} : memref<8x128xf32, #tpu.memory_space<vmem>>, vector<8x128xf32>,
    return
  }
}

</mosaic_0001>

<llo_original>
// kernel: tpu_custom_call.1
$region0: #{tpu_custom_call.1}
  #allocation0 [shape = 'u32[]', space=smem, size = 0x4, offset = 0x4, fixed_abs, tag = 'smem constant byte address 0x4 - core index']
  #allocation1 [shape = 'u32[144,128]{1,0:T(1,128)}', space=vmem, size = 0x12000, scoped, tag = 'internal scratch']
  %s0 = inlined_call_operand.vmem [shape: f32[4,128], index: 0, kind: input, shape index: {}]
  %s1 = inlined_call_operand.vmem [shape: f32[3,8,4], index: 1, kind: input, shape index: {}]
  %s2 = inlined_call_operand.vmem [shape: f32[3,8,1], index: 2, kind: input, shape index: {}]
  %s3 = inlined_call_operand.hbm [shape: f32[8,128], index: 3, kind: output, shape index: {}]
  %s4 = sld [smem:[#allocation0]]
  $region22: #{tpu_custom_call.1} parent=0
    _
  %s6 = ssub.s32 1, %s4
  %s7 = scalar_select 0, %s6, %s4
  $region1: #{tpu_custom_call.1} parent=0
    #allocation2 [shape = 'u8[4096]{0}', space=vmem, size = 0x1000, scoped, tag = 'output window, operand 0, single buffered']
    #allocation3 [shape = 's32[1]{0}', space=sflag, size = 0x4, scoped, tag = 'scoped memory for tpu_custom_call.1']
    %8 = vsyncpa [#allocation3], 0
    // Predicated region
    $region2: #{tpu_custom_call.1} parent=1 // pred_check
      _
    $region3: #{tpu_custom_call.1} parent=1 // pred_check_branch
      %10 = sbr.rel (0) target = $region5
    $region4: #{tpu_custom_call.1} parent=1 // pred_region
      _
    $region5: #{tpu_custom_call.1} parent=1 // pred_fallthru
      _
    // Predicated region
    $region6: #{tpu_custom_call.1} parent=1 // pred_check
      _
    $region7: #{tpu_custom_call.1} parent=1 // pred_check_branch
      %12 = sbr.rel (0) target = $region9
    $region8: #{tpu_custom_call.1} parent=1 // pred_region
      _
    $region9: #{tpu_custom_call.1} parent=1 // pred_fallthru
      _
    // Predicated region
    $region10: #{tpu_custom_call.1} parent=1 // pred_check
      _
    $region11: #{tpu_custom_call.1} parent=1 // pred_check_branch
      %14 = sbr.rel (0) target = $region13
    $region12: #{tpu_custom_call.1} parent=1 // pred_region
      _
    $region13: #{tpu_custom_call.1} parent=1 // pred_fallthru
      _
    %v15 = vld [vmem:[%s0] sm:$0xf]
    %v16 = vlaneseq
    %v17 = vand.u32 %v16, 127
    %vm18 = vcmp.lt.s32.totalorder %v17, 0
    %v19 = vsub.s32 0, %v17
    %v20 = vsel %vm18, %v19, %v17
    %v21 = vshrl.u32 %v20, 4
    %v22 = vand.u32 %v20, 15
    %v23 = vsub.s32 0, %v22
    %v24 = vsel %vm18, %v23, %v22
    %vm25 = vcmp.ne.s32.totalorder %v24, 0
    %vm26 = vcmp.lt.s32.totalorder %v24, 0
    %vm27 = vmand %vm26, %vm25
    %v28 = vadd.s32 %v24, 16
    %v29 = vsel %vm27, %v28, %v24
    %31 = vrot.lane.b32.xlu0 %v15, 1
    %v32 = vpop.permute.xlu0 %31
    %vm34 = vcmask 7168
    %v35 = vsel %vm34, 0.0, %v32
    %36 = vrot.lane.b32.xlu0 %v15, 127
    %v37 = vpop.permute.xlu0 %36
    %vm39 = vcmask 1039360
    %v40 = vsel %vm39, %v37, 0.0
    %vm41 = vcmp.eq.s32.totalorder %v29, 0
    %v42 = vsel %vm41, 1, 0
    %vm43 = vcmp.eq.s32.totalorder %v42, 1
    %v44 = vsel %vm43, 0.0, %v35
    %vm45 = vcmp.eq.s32.totalorder %v29, 15
    %v46 = vsel %vm45, 1, 0
    %vm47 = vcmp.eq.s32.totalorder %v46, 1
    %v48 = vsel %vm47, 0.0, %v40
    %v49 = vld [vmem:[%s1] sm:$0xff]
    %s50 = scalar_lea.vmem %s1, 8
    %v51 = vld [vmem:[%s50] sm:$0xff]
    %s52 = scalar_lea.vmem %s1, 16
    %v53 = vld [vmem:[%s52] sm:$0xff]
    %v54 = vld [vmem:[%s2] sm:$0xff]
    %s55 = scalar_lea.vmem %s2, 8
    %v56 = vld [vmem:[%s55] sm:$0xff]
    %s57 = scalar_lea.vmem %s2, 16
    %v58 = vld [vmem:[%s57] sm:$0xff]
    %vm59 = vcmask 31744
    %v61 = vsel %vm59, %v49, 0
    %vm63 = vcmask 1043456
    %v65 = vsel %vm63, %v44, 0
    %67 = vmatprep.subr.mxu0 0.0
    %68 = vmatpush1.msra.mxu0 %v65
    %69 = vmatprep.subr.mxu0 0.0
    %70 = vmatpush1.msra.mxu0 0.0
    %71 = vmatprep.subr.mxu0 0.0
    %72 = vmatpush1.msra.mxu0 0.0
    %73 = vmatprep.subr.mxu0 0.0
    %74 = vmatpush1.msra.mxu0 0.0
    %75 = vmatprep.subr.mxu0 0.0
    %76 = vmatpush1.msra.mxu0 0.0
    %77 = vmatprep.subr.mxu0 0.0
    %78 = vmatpush1.msra.mxu0 0.0
    %79 = vmatprep.subr.mxu0 0.0
    %80 = vmatpush1.msra.mxu0 0.0
    %81 = vmatprep.subr.mxu0 0.0
    %82 = vmatpush1.msra.mxu0 0.0
    %83 = vmatprep.subr.mxu0 0.0
    %84 = vmatpush1.msra.mxu0 0.0
    %85 = vmatprep.subr.mxu0 0.0
    %86 = vmatpush1.msra.mxu0 0.0
    %87 = vmatprep.subr.mxu0 0.0
    %88 = vmatpush1.msra.mxu0 0.0
    %89 = vmatprep.subr.mxu0 0.0
    %90 = vmatpush1.msra.mxu0 0.0
    %91 = vmatprep.subr.mxu0 0.0
    %92 = vmatpush1.msra.mxu0 0.0
    %93 = vmatprep.subr.mxu0 0.0
    %94 = vmatpush1.msra.mxu0 0.0
    %95 = vmatprep.subr.mxu0 0.0
    %96 = vmatpush1.msra.mxu0 0.0
    %97 = vmatprep.subr.mxu0 0.0
    %98 = vmatpush1.msra.mxu0 0.0
    %99 = vmatprep.subr.mxu0 0.0
    %100 = vmatpush1.msra.mxu0 0.0
    %101 = vmatprep.subr.mxu0 0.0
    %102 = vmatpush1.msra.mxu0 0.0
    %103 = vmatprep.subr.mxu0 0.0
    %104 = vmatpush1.msra.mxu0 0.0
    %105 = vmatprep.subr.mxu0 0.0
    %106 = vmatpush1.msra.mxu0 0.0
    %107 = vmatprep.subr.mxu0 0.0
    %108 = vmatpush1.msra.mxu0 0.0
    %109 = vmatprep.subr.mxu0 0.0
    %110 = vmatpush1.msra.mxu0 0.0
    %111 = vmatprep.subr.mxu0 0.0
    %112 = vmatpush1.msra.mxu0 0.0
    %113 = vmatprep.subr.mxu0 0.0
    %114 = vmatpush1.msra.mxu0 0.0
    %115 = vmatprep.subr.mxu0 0.0
    %116 = vmatpush1.msra.mxu0 0.0
    %117 = vmatprep.subr.mxu0 0.0
    %118 = vmatpush1.msra.mxu0 0.0
    %119 = vmatprep.subr.mxu0 0.0
    %120 = vmatpush1.msra.mxu0 0.0
    %121 = vmatprep.subr.mxu0 0.0
    %122 = vmatpush1.msra.mxu0 0.0
    %123 = vmatprep.subr.mxu0 0.0
    %124 = vmatpush1.msra.mxu0 0.0
    %125 = vmatprep.subr.mxu0 0.0
    %126 = vmatpush1.msra.mxu0 0.0
    %127 = vmatprep.subr.mxu0 0.0
    %128 = vmatpush1.msra.mxu0 0.0
    %129 = vmatprep.subr.mxu0 0.0
    %130 = vmatpush1.msra.mxu0 0.0
    %131 = vmatprep.mubr.f32.mxu0 0.0
    %132 = vmatmul.mubr.f32.gmra.mrb[0].mxu0 %v61
    %v133 = vpop.f32.mrb[0].mxu0
    %v134 = vadd.f32 0.0, %v133
    %v135 = vpop.f32.mrb[0].mxu0
    %136 = vdwg.mxu0
    %v138 = vsel %vm59, %v51, 0
    %v140 = vsel %vm63, %v15, 0
    %142 = vmatprep.subr.mxu0 0.0
    %143 = vmatpush1.msra.mxu0 %v140
    %144 = vmatprep.subr.mxu0 0.0
    %145 = vmatpush1.msra.mxu0 0.0
    %146 = vmatprep.subr.mxu0 0.0
    %147 = vmatpush1.msra.mxu0 0.0
    %148 = vmatprep.subr.mxu0 0.0
    %149 = vmatpush1.msra.mxu0 0.0
    %150 = vmatprep.subr.mxu0 0.0
    %151 = vmatpush1.msra.mxu0 0.0
    %152 = vmatprep.subr.mxu0 0.0
    %153 = vmatpush1.msra.mxu0 0.0
    %154 = vmatprep.subr.mxu0 0.0
    %155 = vmatpush1.msra.mxu0 0.0
    %156 = vmatprep.subr.mxu0 0.0
    %157 = vmatpush1.msra.mxu0 0.0
    %158 = vmatprep.subr.mxu0 0.0
    %159 = vmatpush1.msra.mxu0 0.0
    %160 = vmatprep.subr.mxu0 0.0
    %161 = vmatpush1.msra.mxu0 0.0
    %162 = vmatprep.subr.mxu0 0.0
    %163 = vmatpush1.msra.mxu0 0.0
    %164 = vmatprep.subr.mxu0 0.0
    %165 = vmatpush1.msra.mxu0 0.0
    %166 = vmatprep.subr.mxu0 0.0
    %167 = vmatpush1.msra.mxu0 0.0
    %168 = vmatprep.subr.mxu0 0.0
    %169 = vmatpush1.msra.mxu0 0.0
    %170 = vmatprep.subr.mxu0 0.0
    %171 = vmatpush1.msra.mxu0 0.0
    %172 = vmatprep.subr.mxu0 0.0
    %173 = vmatpush1.msra.mxu0 0.0
    %174 = vmatprep.subr.mxu0 0.0
    %175 = vmatpush1.msra.mxu0 0.0
    %176 = vmatprep.subr.mxu0 0.0
    %177 = vmatpush1.msra.mxu0 0.0
    %178 = vmatprep.subr.mxu0 0.0
    %179 = vmatpush1.msra.mxu0 0.0
    %180 = vmatprep.subr.mxu0 0.0
    %181 = vmatpush1.msra.mxu0 0.0
    %182 = vmatprep.subr.mxu0 0.0
    %183 = vmatpush1.msra.mxu0 0.0
    %184 = vmatprep.subr.mxu0 0.0
    %185 = vmatpush1.msra.mxu0 0.0
    %186 = vmatprep.subr.mxu0 0.0
    %187 = vmatpush1.msra.mxu0 0.0
    %188 = vmatprep.subr.mxu0 0.0
    %189 = vmatpush1.msra.mxu0 0.0
    %190 = vmatprep.subr.mxu0 0.0
    %191 = vmatpush1.msra.mxu0 0.0
    %192 = vmatprep.subr.mxu0 0.0
    %193 = vmatpush1.msra.mxu0 0.0
    %194 = vmatprep.subr.mxu0 0.0
    %195 = vmatpush1.msra.mxu0 0.0
    %196 = vmatprep.subr.mxu0 0.0
    %197 = vmatpush1.msra.mxu0 0.0
    %198 = vmatprep.subr.mxu0 0.0
    %199 = vmatpush1.msra.mxu0 0.0
    %200 = vmatprep.subr.mxu0 0.0
    %201 = vmatpush1.msra.mxu0 0.0
    %202 = vmatprep.subr.mxu0 0.0
    %203 = vmatpush1.msra.mxu0 0.0
    %204 = vmatprep.subr.mxu0 0.0
    %205 = vmatpush1.msra.mxu0 0.0
    %206 = vmatprep.mubr.f32.mxu0 0.0
    %207 = vmatmul.mubr.f32.gmra.mrb[0].mxu0 %v138
    %v208 = vpop.f32.mrb[0].mxu0
    %v209 = vadd.f32 %v134, %v208
    %v210 = vpop.f32.mrb[0].mxu0
    %211 = vdwg.mxu0
    %v213 = vsel %vm59, %v53, 0
    %v216 = vsel %vm63, %v48, 0
    %218 = vmatprep.subr.mxu0 0.0
    %219 = vmatpush1.msra.mxu0 %v216
    %220 = vmatprep.subr.mxu0 0.0
    %221 = vmatpush1.msra.mxu0 0.0
    %222 = vmatprep.subr.mxu0 0.0
    %223 = vmatpush1.msra.mxu0 0.0
    %224 = vmatprep.subr.mxu0 0.0
    %225 = vmatpush1.msra.mxu0 0.0
    %226 = vmatprep.subr.mxu0 0.0
    %227 = vmatpush1.msra.mxu0 0.0
    %228 = vmatprep.subr.mxu0 0.0
    %229 = vmatpush1.msra.mxu0 0.0
    %230 = vmatprep.subr.mxu0 0.0
    %231 = vmatpush1.msra.mxu0 0.0
    %232 = vmatprep.subr.mxu0 0.0
    %233 = vmatpush1.msra.mxu0 0.0
    %234 = vmatprep.subr.mxu0 0.0
    %235 = vmatpush1.msra.mxu0 0.0
    %236 = vmatprep.subr.mxu0 0.0
    %237 = vmatpush1.msra.mxu0 0.0
    %238 = vmatprep.subr.mxu0 0.0
    %239 = vmatpush1.msra.mxu0 0.0
    %240 = vmatprep.subr.mxu0 0.0
    %241 = vmatpush1.msra.mxu0 0.0
    %242 = vmatprep.subr.mxu0 0.0
    %243 = vmatpush1.msra.mxu0 0.0
    %244 = vmatprep.subr.mxu0 0.0
    %245 = vmatpush1.msra.mxu0 0.0
    %246 = vmatprep.subr.mxu0 0.0
    %247 = vmatpush1.msra.mxu0 0.0
    %248 = vmatprep.subr.mxu0 0.0
    %249 = vmatpush1.msra.mxu0 0.0
    %250 = vmatprep.subr.mxu0 0.0
    %251 = vmatpush1.msra.mxu0 0.0
    %252 = vmatprep.subr.mxu0 0.0
    %253 = vmatpush1.msra.mxu0 0.0
    %254 = vmatprep.subr.mxu0 0.0
    %255 = vmatpush1.msra.mxu0 0.0
    %256 = vmatprep.subr.mxu0 0.0
    %257 = vmatpush1.msra.mxu0 0.0
    %258 = vmatprep.subr.mxu0 0.0
    %259 = vmatpush1.msra.mxu0 0.0
    %260 = vmatprep.subr.mxu0 0.0
    %261 = vmatpush1.msra.mxu0 0.0
    %262 = vmatprep.subr.mxu0 0.0
    %263 = vmatpush1.msra.mxu0 0.0
    %264 = vmatprep.subr.mxu0 0.0
    %265 = vmatpush1.msra.mxu0 0.0
    %266 = vmatprep.subr.mxu0 0.0
    %267 = vmatpush1.msra.mxu0 0.0
    %268 = vmatprep.subr.mxu0 0.0
    %269 = vmatpush1.msra.mxu0 0.0
    %270 = vmatprep.subr.mxu0 0.0
    %271 = vmatpush1.msra.mxu0 0.0
    %272 = vmatprep.subr.mxu0 0.0
    %273 = vmatpush1.msra.mxu0 0.0
    %274 = vmatprep.subr.mxu0 0.0
    %275 = vmatpush1.msra.mxu0 0.0
    %276 = vmatprep.subr.mxu0 0.0
    %277 = vmatpush1.msra.mxu0 0.0
    %278 = vmatprep.subr.mxu0 0.0
    %279 = vmatpush1.msra.mxu0 0.0
    %280 = vmatprep.subr.mxu0 0.0
    %281 = vmatpush1.msra.mxu0 0.0
    %282 = vmatprep.mubr.f32.mxu0 0.0
    %283 = vmatmul.mubr.f32.gmra.mrb[0].mxu0 %v213
    %v284 = vpop.f32.mrb[0].mxu0
    %v285 = vadd.f32 0.0, %v284
    %v286 = vpop.f32.mrb[0].mxu0
    %287 = vdwg.mxu0
    %v288 = vadd.f32 %v209, %v285
    %290 = vset.pattern.permute.xlu0 0
    %291 = vperm.xlu0 %290, %v54
    %v292 = vpop.permute.xlu0 %291
    %v294 = vadd.f32 %v288, %v292
    %vm295 = vcmp.lt.s32.totalorder %v17, 32
    %v296 = vsel %vm295, 1, 0
    %vm297 = vcmp.eq.s32.totalorder %v296, 1
    %v298 = vsel %vm297, %v294, 0.0
    %299 = vadd.xlane.f32.xlu0 %v298
    %v300 = vpop.xlane.xlu0 %299
    %v301 = vmul.f32 %v294, %v294
    %v302 = vsel %vm297, %v301, 0.0
    %303 = vadd.xlane.f32.xlu0 %v302
    %v304 = vpop.xlane.xlu0 %303
    %v305 = vmul.f32 %v300, 0.03125
    %v306 = vmul.f32 %v304, 0.03125
    %v307 = vmul.f32 %v305, %v305
    %v308 = vsub.f32 %v306, %v307
    %v309 = vmax.f32 %v308, 0.0
    %v310 = vadd.f32 %v309, 1e-05
    %v311 = vrsqrt.pop %v310
    %v312 = vsub.f32 %v294, %v305
    %314 = vset.pattern.permute.xlu0 0
    %315 = vperm.xlu0 %314, %v56
    %v316 = vpop.permute.xlu0 %315
    %v318 = vmul.f32 %v316, %v312
    %v319 = vmul.f32 %v318, %v311
    %321 = vset.pattern.permute.xlu0 0
    %322 = vperm.xlu0 %321, %v58
    %v323 = vpop.permute.xlu0 %322
    %v325 = vadd.f32 %v319, %v323
    %v326 = vmax.f32 %v325, 0.0
    %327 = vst [vmem:[#allocation2] sm:$0xff] %v326
    // Predicated region
    $region14: #{tpu_custom_call.1} parent=1 // pred_check
      _
    $region15: #{tpu_custom_call.1} parent=1 // pred_check_branch
      %329 = sbr.rel (0) target = $region17
    $region16: #{tpu_custom_call.1} parent=1 // pred_region
      %s331 = ssub.s32 128, 128
      %332 = vsyncadd [#allocation3], %s331
      %s334 = sshll.u32 [#allocation2], 4
      %s335 = int_to_ptr.vmem [resolvable:$true] %s334
      %337 = dma.vmem_to_hbm [thread:$0]  %s335, 128, %s3, [#allocation3]
    $region17: #{tpu_custom_call.1} parent=1 // pred_fallthru
      _
    // Predicated region
    $region18: #{tpu_custom_call.1} parent=1 // pred_check
      _
    $region19: #{tpu_custom_call.1} parent=1 // pred_check_branch
      %339 = sbr.rel (0) target = $region21
    $region20: #{tpu_custom_call.1} parent=1 // pred_region
      %340 = dma.done [#allocation3], 128
    $region21: #{tpu_custom_call.1} parent=1 // pred_fallthru
      _
    %341 = vsyncpa [#allocation3], 1

</llo_original>
